<compile_context>
chip_gen: v5e
topology: v5e:2x2
jax: 0.10.0
libtpu: 0.0.40
codegen_flags: <defaults>
</compile_context>

<pallas_src>
import functools

import jax
import jax.numpy as jnp
from jax.experimental import pallas as pl
from jax.experimental.pallas import tpu as pltpu

_LANES = 128
# 4096 x 128 x 4B = 2 MiB per input block -> ~8 MiB with two double-buffered
# inputs; comfortably under the explicit 32 MiB scoped-VMEM limit below on all
# generations (v7x physical VMEM is 64 MiB).  Sweep 2048/4096/8192.
_DEFAULT_BLOCK_ROWS = 4096
# v7x has 2 TensorCores per chip; the leading "parallel" grid axis shards the
# streaming reduction across them.  On 1-TC chips it just runs serially.
_NUM_CORE_SPLITS = 2
_VMEM_LIMIT_BYTES = 32 * 1024 * 1024


def _sublane_align(dtype):
    """Packed sublane tile rows for a dtype: 8 (f32), 16 (bf16), 32 (i8/fp8)."""
    return 8 * max(1, 4 // jnp.dtype(dtype).itemsize)


def _as_slab(x):
    """Reshape (free) to a lane-dense (rows, 128) slab in the native dtype.

    When numel % 128 == 0 this is a pure reshape (no copy).  Otherwise we pad
    with zeros (a copy of the operand) -- harmless for squared-difference
    reductions because both operands get identical zero padding (diff == 0).
    """
    flat = x.reshape(-1)
    n = flat.shape[0]
    pad = (-n) % _LANES
    if pad:
        # TODO(synk): avoid this full-operand copy by masking the lane tail
        # in-kernel; only triggers when numel % 128 != 0.
        flat = jnp.pad(flat, (0, pad))
    return flat.reshape(-1, _LANES)


# ---------------------------------------------------------------------------
# Kernel 1: fused generator-loss reductions.
#   Streams the (net_in, x_hat) slab over a (core_split, row_block) grid; the
#   squared diff of each block is folded (pure VALU) into a tiny (8,128) f32
#   accumulator, and the single cross-lane/sublane reduce happens once per
#   core in the epilogue.  The small feat/z tensors stay resident (constant
#   index_map) and are reduced once in the same epilogue.
#   Outputs four per-core partial sums:
#     sum((x - x_hat)^2), sum((feat_r - feat_f)^2), sum((z - z_hat)^2), sum(z^2)
# ---------------------------------------------------------------------------
def _gen_loss_kernel(x_ref, xh_ref, fr_ref, ff_ref, z_ref, zh_ref,
                     rec_ref, adv_ref, enc_ref, emb_ref, acc_ref,
                     *, total_rows, block_rows, steps_per_split,
                     n_full_blocks, needs_mask):
    c = pl.program_id(0)              # core split
    i = pl.program_id(1)              # row-block step within this split
    blk = c * steps_per_split + i     # logical (unclamped) block id

    @pl.when(i == 0)
    def _():
        acc_ref[...] = jnp.zeros_like(acc_ref)

    d = x_ref[...].astype(jnp.float32) - xh_ref[...].astype(jnp.float32)
    sq = d * d

    if block_rows % 8 == 0:
        # Layout-preserving fold of (bm,128) into (8,128): pure VALU adds.
        def _fold(v):
            return v.reshape(block_rows // 8, 8, _LANES).sum(axis=0)
    else:
        # Tiny single-block case (bm == rows < 8-aligned); keep full block.
        def _fold(v):
            return v

    if needs_mask:
        # Full blocks take the cheap path; only tail / padded iterations mask.
        @pl.when(blk < n_full_blocks)
        def _():
            acc_ref[...] += _fold(sq)

        @pl.when(blk >= n_full_blocks)
        def _():
            rem = total_rows - blk * block_rows      # <= 0 for padded iters
            row_idx = jax.lax.broadcasted_iota(jnp.int32, sq.shape, 0)
            acc_ref[...] += _fold(jnp.where(row_idx < rem, sq, 0.0))
    else:
        acc_ref[...] += _fold(sq)

    @pl.when(i == pl.num_programs(1) - 1)
    def _():
        # One cross-lane/sublane reduce per core, only in the epilogue.
        rec_ref[...] = jnp.sum(acc_ref[...], keepdims=True)
        df = fr_ref[...].astype(jnp.float32) - ff_ref[...].astype(jnp.float32)
        adv_ref[...] = jnp.sum(df * df, keepdims=True)
        zz = z_ref[...].astype(jnp.float32)
        dz = zz - zh_ref[...].astype(jnp.float32)
        enc_ref[...] = jnp.sum(dz * dz, keepdims=True)
        emb_ref[...] = jnp.sum(zz * zz, keepdims=True)


def _generator_call(net_in, x_hat, feat_real, feat_fake, z, z_hat,
                    *, block_rows, buffer_depth):
    """Builds/launches the fused kernel; returns the four mean reductions."""
    n_img = net_in.size
    n_feat = feat_real.size
    n_z = z.size

    xs = _as_slab(net_in)
    xhs = _as_slab(x_hat)
    rows = xs.shape[0]

    fr = feat_real.reshape(feat_real.shape[0], -1)
    ff = feat_fake.reshape(feat_fake.shape[0], -1)

    # Block rows aligned to the packed sublane tile of the input dtypes.
    align = max(_sublane_align(xs.dtype), _sublane_align(xhs.dtype))
    if rows <= block_rows:
        bm = rows                                    # single full-array block
        grid_steps = 1
    else:
        bm = max(align, (block_rows // align) * align)
        grid_steps = pl.cdiv(rows, bm)

    n_splits = _NUM_CORE_SPLITS if grid_steps >= 2 else 1
    spc = pl.cdiv(grid_steps, n_splits)              # row blocks per core
    n_full = rows // bm                              # fully-valid blocks
    needs_mask = (n_splits * spc * bm) != rows
    last_blk = grid_steps - 1

    def slab_map(c, i):
        # Clamp so padded iterations re-read an in-bounds block (their
        # contribution is fully masked to zero inside the kernel).
        return (jnp.minimum(c * spc + i, last_blk), 0)

    if buffer_depth == 2:
        slab_spec = pl.BlockSpec((bm, _LANES), slab_map)
    else:
        # TODO(synk): sweep buffer_depth=3 on v7x (short per-step DMA there).
        slab_spec = pl.BlockSpec((bm, _LANES), slab_map,
                                 pipeline_mode=pl.Buffered(buffer_depth))

    acc_rows = 8 if bm % 8 == 0 else bm
    scalar = jax.ShapeDtypeStruct((n_splits, 1), jnp.float32)
    scalar_spec = pl.BlockSpec((1, 1), lambda c, i: (c, 0))

    kernel = functools.partial(
        _gen_loss_kernel, total_rows=rows, block_rows=bm,
        steps_per_split=spc, n_full_blocks=n_full, needs_mask=needs_mask)

    rec_p, adv_p, enc_p, emb_p = pl.pallas_call(
        kernel,
        out_shape=(scalar, scalar, scalar, scalar),
        grid_spec=pltpu.PrefetchScalarGridSpec(
            num_scalar_prefetch=0,
            grid=(n_splits, spc),
            in_specs=[
                slab_spec, slab_spec,
                # Small tensors: constant block index -> resident, no re-DMA.
                pl.BlockSpec(fr.shape, lambda c, i: (0, 0)),
                pl.BlockSpec(ff.shape, lambda c, i: (0, 0)),
                pl.BlockSpec(z.shape, lambda c, i: (0, 0)),
                pl.BlockSpec(z_hat.shape, lambda c, i: (0, 0)),
            ],
            out_specs=(scalar_spec, scalar_spec, scalar_spec, scalar_spec),
            scratch_shapes=[pltpu.VMEM((acc_rows, _LANES), jnp.float32)],
        ),
        compiler_params=pltpu.CompilerParams(
            dimension_semantics=("parallel", "arbitrary"),
            vmem_limit_bytes=_VMEM_LIMIT_BYTES),
    )(xs, xhs, fr, ff, z, z_hat)

    mean_rec = jnp.sum(rec_p) / n_img        # sum the per-core partials
    mean_adv = adv_p[0, 0] / n_feat          # identical on every core
    mean_enc = enc_p[0, 0] / n_z
    mean_zsq = emb_p[0, 0] / n_z
    return mean_rec, mean_adv, mean_enc, mean_zsq


@functools.partial(jax.jit, static_argnames=("block_rows", "buffer_depth"))
def generator_means(net_in, x_hat, feat_real, feat_fake, z, z_hat,
                    *, block_rows=_DEFAULT_BLOCK_ROWS, buffer_depth=2):
    """Returns (mean_rec, mean_adv, mean_enc, mean_z_sq) device scalars."""
    return _generator_call(net_in, x_hat, feat_real, feat_fake, z, z_hat,
                           block_rows=block_rows, buffer_depth=buffer_depth)


@functools.partial(jax.jit,
                   static_argnames=("beta", "w_adv", "w_rec", "w_enc",
                                    "block_rows", "buffer_depth"))
def generator_loss(net_in, x_hat, feat_real, feat_fake, z, z_hat, *,
                   beta, w_adv=1.0, w_rec=50.0, w_enc=1.0,
                   block_rows=_DEFAULT_BLOCK_ROWS, buffer_depth=2):
    """Whole 'g'-branch in one jit: kernel + weighted combination."""
    mean_rec, mean_adv, mean_enc, mean_zsq = _generator_call(
        net_in, x_hat, feat_real, feat_fake, z, z_hat,
        block_rows=block_rows, buffer_depth=buffer_depth)
    loss_g = (w_adv * mean_adv + w_rec * mean_rec + w_enc * mean_enc
              + beta * mean_zsq)
    return loss_g, mean_adv, mean_rec, mean_enc


# ---------------------------------------------------------------------------
# Kernel 2: per-sample MSE along dim=1 (anomaly score): (B, Dz) -> (B,)
#   Inputs arrive transposed (Dz, B) so the reduce runs over sublanes and the
#   output is a lane-dense (1, B) row (unmasked stores); no wrapper padding.
# ---------------------------------------------------------------------------
def _row_mse_kernel(zT_ref, zhT_ref, o_ref):
    d = zT_ref[...].astype(jnp.float32) - zhT_ref[...].astype(jnp.float32)
    o_ref[...] = jnp.mean(d * d, axis=0, keepdims=True)


@jax.jit
def per_sample_mse(z, z_hat):
    B, Dz = z.shape
    zT = jnp.transpose(z)          # tiny copy; latent tensors are small
    zhT = jnp.transpose(z_hat)
    # TODO(synk): tile over B with a grid if B * Dz ever outgrows VMEM.
    out = pl.pallas_call(
        _row_mse_kernel,
        out_shape=jax.ShapeDtypeStruct((1, B), jnp.float32),
        in_specs=[pl.BlockSpec((Dz, B), lambda: (0, 0)),
                  pl.BlockSpec((Dz, B), lambda: (0, 0))],
        out_specs=pl.BlockSpec((1, B), lambda: (0, 0)),
    )(zT, zhT)
    return out[0]


# ---------------------------------------------------------------------------
# Kernel 3: discriminator BCE loss
#   loss_d = 0.5 * (BCE(pred_real, 1) + BCE(pred_fake, 0))
#          = 0.5 * (mean(-log(pred_real)) + mean(-log(1 - pred_fake)))
#   PyTorch BCELoss clamps each log term at -100 (replicated here).
# ---------------------------------------------------------------------------
def _bce_d_kernel(pr_ref, pf_ref, o_ref):
    pr = pr_ref[...].astype(jnp.float32)
    pf = pf_ref[...].astype(jnp.float32)
    log_pr = jnp.maximum(jnp.log(pr), -100.0)
    log_1mpf = jnp.maximum(jnp.log(1.0 - pf), -100.0)
    loss_real = -jnp.mean(log_pr, keepdims=True)
    loss_fake = -jnp.mean(log_1mpf, keepdims=True)
    o_ref[...] = 0.5 * (loss_real + loss_fake)


@jax.jit
def bce_d_loss(pred_real, pred_fake_detach):
    pr = pred_real.reshape(1, -1)
    pf = pred_fake_detach.reshape(1, -1)
    out = pl.pallas_call(
        _bce_d_kernel,
        out_shape=jax.ShapeDtypeStruct((1, 1), jnp.float32),
        in_specs=[pl.BlockSpec(pr.shape, lambda: (0, 0)),
                  pl.BlockSpec(pf.shape, lambda: (0, 0))],
        out_specs=pl.BlockSpec((1, 1), lambda: (0, 0)),
    )(pr, pf)
    return out[0, 0]


# ---------------------------------------------------------------------------
# GANomalyLoss (JAX / Pallas port of the PyTorch module forward pass)
# ---------------------------------------------------------------------------
class GANomalyLoss:
    def __init__(self, beta=0.0, grad_pen_weight=0.0):
        self.w_adv = 1.0
        self.w_rec = 50.0
        self.w_enc = 1.0
        self.grad_pen_weight = grad_pen_weight   # unused in forward (parity)
        self.beta = float(beta)

    def __call__(self, net_in, net_out, mode="g", anomaly_score=False):
        z = net_out["z"]
        if anomaly_score:
            return per_sample_mse(z, net_out["z_hat"])
        if mode == "g":
            # Component losses are returned as device scalars (no .item()
            # host sync); convert on the host after block_until_ready.
            return generator_loss(
                net_in, net_out["x_hat"], net_out["feat_real"],
                net_out["feat_fake"], z, net_out["z_hat"],
                beta=self.beta, w_adv=self.w_adv, w_rec=self.w_rec,
                w_enc=self.w_enc)
        # mode == 'd'
        return bce_d_loss(net_out["pred_real"], net_out["pred_fake_detach"])


# ---------------------------------------------------------------------------
# Demo / smoke test
# ---------------------------------------------------------------------------
if __name__ == "__main__":
    key = jax.random.PRNGKey(0)
    (kx, kxh, kz, kzh, kfr, kff, kpr, kpf,
     ka, kb, kc, kd) = jax.random.split(key, 12)

    B, C, H, W = 2, 4, 16, 16      # images, NCHW
    Dz = 32                        # latent dim
    FC, FH, FW = 8, 4, 4           # discriminator feature maps

    net_in = jax.random.normal(kx, (B, C, H, W), jnp.float32)
    net_out = {
        "x_hat": jax.random.normal(kxh, (B, C, H, W), jnp.float32),
        "z": jax.random.normal(kz, (B, Dz), jnp.float32),
        "z_hat": jax.random.normal(kzh, (B, Dz), jnp.float32),
        "feat_real": jax.random.normal(kfr, (B, FC, FH, FW), jnp.float32),
        "feat_fake": jax.random.normal(kff, (B, FC, FH, FW), jnp.float32),
        "pred_real": jax.nn.sigmoid(jax.random.normal(kpr, (B,), jnp.float32)),
        "pred_fake_detach": jax.nn.sigmoid(
            jax.random.normal(kpf, (B,), jnp.float32)),
    }

    loss_fn = GANomalyLoss(beta=0.5)

    # --- generator loss (fused single kernel + in-jit combination) ---
    loss_g, loss_adv, loss_rec, loss_enc = loss_fn(net_in, net_out, mode="g")
    loss_g = jax.block_until_ready(loss_g)
    loss_adv_f = float(loss_adv)
    loss_rec_f = float(loss_rec)
    loss_enc_f = float(loss_enc)

    # --- anomaly score (per-sample) ---
    score = jax.block_until_ready(loss_fn(net_in, net_out, anomaly_score=True))

    # --- discriminator loss ---
    loss_d = jax.block_until_ready(loss_fn(net_in, net_out, mode="d"))

    # ---- pure-JAX reference check ----
    def ref_mse(a, b):
        return jnp.mean((a - b) ** 2)

    z, zh = net_out["z"], net_out["z_hat"]
    ref_adv = ref_mse(net_out["feat_real"], net_out["feat_fake"])
    ref_rec = ref_mse(net_in, net_out["x_hat"])
    ref_enc = ref_mse(z, zh)
    ref_emb = 0.5 * jnp.mean(z ** 2)
    ref_g = 1.0 * ref_adv + 50.0 * ref_rec + 1.0 * ref_enc + ref_emb
    ref_score = jnp.mean((z - zh) ** 2, axis=1)
    pr, pf = net_out["pred_real"], net_out["pred_fake_detach"]
    ref_d = 0.5 * (jnp.mean(-jnp.log(pr)) + jnp.mean(-jnp.log(1.0 - pf)))

    assert jnp.allclose(loss_g, ref_g, rtol=1e-5, atol=1e-5)
    assert abs(loss_adv_f - float(ref_adv)) < 1e-5
    assert abs(loss_rec_f - float(ref_rec)) < 1e-5
    assert abs(loss_enc_f - float(ref_enc)) < 1e-5
    assert jnp.allclose(score, ref_score, rtol=1e-5, atol=1e-5)
    assert jnp.allclose(loss_d, ref_d, rtol=1e-5, atol=1e-5)

    # ---- exercise the multi-block grid: 2-way core split, a partial last
    #      block and a fully-padded (clamped+masked) iteration ----
    a_big = jax.random.normal(ka, (4, 5, 128), jnp.float32)   # 2560 el = 20 rows
    b_big = jax.random.normal(kb, (4, 5, 128), jnp.float32)
    m_rec, m_adv, m_enc, m_zsq = generator_means(
        a_big, b_big, net_out["feat_real"], net_out["feat_fake"], z, zh,
        block_rows=8)
    m_rec = jax.block_until_ready(m_rec)
    assert jnp.allclose(m_rec, ref_mse(a_big, b_big), rtol=1e-5, atol=1e-5)
    assert jnp.allclose(m_adv, ref_adv, rtol=1e-5, atol=1e-5)
    assert jnp.allclose(m_enc, ref_enc, rtol=1e-5, atol=1e-5)
    assert jnp.allclose(m_zsq, jnp.mean(z ** 2), rtol=1e-5, atol=1e-5)

    # ---- exercise the ragged-numel (pad fallback) + ragged-tail mask path ----
    a2 = jax.random.normal(kc, (3, 5, 7, 11), jnp.float32)    # 1155 el -> 10 rows
    b2 = jax.random.normal(kd, (3, 5, 7, 11), jnp.float32)
    r2, adv2, enc2, emb2 = generator_means(
        a2, b2, net_out["feat_real"], net_out["feat_fake"], z, zh,
        block_rows=8)
    r2 = jax.block_until_ready(r2)
    assert jnp.allclose(r2, ref_mse(a2, b2), rtol=1e-5, atol=1e-5)
    assert jnp.allclose(adv2, ref_adv, rtol=1e-5, atol=1e-5)
    assert jnp.allclose(enc2, ref_enc, rtol=1e-5, atol=1e-5)
    assert jnp.allclose(emb2, jnp.mean(z ** 2), rtol=1e-5, atol=1e-5)

    print("KERNEL_OK")
</pallas_src>

<mosaic_0001>
module attributes {stable_mosaic.version = 11 : i64} {
  func.func @_gen_loss_kernel(%arg0: i32, %arg1: i32, %arg2: memref<16x128xf32, #tpu.memory_space<vmem>>, %arg3: memref<16x128xf32, #tpu.memory_space<vmem>>, %arg4: memref<2x128xf32, #tpu.memory_space<vmem>>, %arg5: memref<2x128xf32, #tpu.memory_space<vmem>>, %arg6: memref<2x32xf32, #tpu.memory_space<vmem>>, %arg7: memref<2x32xf32, #tpu.memory_space<vmem>>, %arg8: memref<1x1xf32, #tpu.memory_space<vmem>>, %arg9: memref<1x1xf32, #tpu.memory_space<vmem>>, %arg10: memref<1x1xf32, #tpu.memory_space<vmem>>, %arg11: memref<1x1xf32, #tpu.memory_space<vmem>>, %arg12: memref<8x128xf32, #tpu.memory_space<vmem>>) attributes {dimension_semantics = [#tpu.dimension_semantics<parallel>, #tpu.dimension_semantics<arbitrary>], iteration_bounds = array<i64: 1, 1>, scalar_prefetch = 0 : i64, scratch_operands = 1 : i64, tpu.core_type = #tpu.core_type<tc>, window_params = [{transform_indices = @transform_0, window_bounds = array<i64: 16, 128>}, {transform_indices = @transform_1, window_bounds = array<i64: 16, 128>}, {pipeline_mode = #tpu.pipeline_mode<synchronous>, transform_indices = @transform_2, window_bounds = array<i64: 2, 128>}, {pipeline_mode = #tpu.pipeline_mode<synchronous>, transform_indices = @transform_3, window_bounds = array<i64: 2, 128>}, {pipeline_mode = #tpu.pipeline_mode<synchronous>, transform_indices = @transform_4, window_bounds = array<i64: 2, 32>}, {pipeline_mode = #tpu.pipeline_mode<synchronous>, transform_indices = @transform_5, window_bounds = array<i64: 2, 32>}, {transform_indices = @transform_6, window_bounds = array<i64: 1, 1>}, {transform_indices = @transform_7, window_bounds = array<i64: 1, 1>}, {transform_indices = @transform_8, window_bounds = array<i64: 1, 1>}, {transform_indices = @transform_9, window_bounds = array<i64: 1, 1>}]} {
    %c0_i32 = arith.constant 0 : i32
    %0 = arith.cmpi eq, %arg1, %c0_i32 : i32
    %1 = arith.extui %0 : i1 to i32
    %c0_i32_0 = arith.constant 0 : i32
    %2 = arith.cmpi ne, %1, %c0_i32_0 : i32
    scf.if %2 {
      %cst_10 = arith.constant 0.000000e+00 : f32
      %15 = vector.broadcast %cst_10 : f32 to vector<8x128xf32>
      %c0_11 = arith.constant 0 : index
      %c0_12 = arith.constant 0 : index
      %16 = vector.load %arg12[%c0_11, %c0_12] : memref<8x128xf32, #tpu.memory_space<vmem>>, vector<8x128xf32>
      tpu.vector_store %arg12[%c0_11, %c0_12], %15 {strides = array<i32>} : memref<8x128xf32, #tpu.memory_space<vmem>>, vector<8x128xf32>,
    } else {
    }
    %c0 = arith.constant 0 : index
    %c0_1 = arith.constant 0 : index
    %3 = vector.load %arg2[%c0, %c0_1] : memref<16x128xf32, #tpu.memory_space<vmem>>, vector<16x128xf32>
    %c0_2 = arith.constant 0 : index
    %c0_3 = arith.constant 0 : index
    %4 = vector.load %arg3[%c0_2, %c0_3] : memref<16x128xf32, #tpu.memory_space<vmem>>, vector<16x128xf32>
    %5 = arith.subf %3, %4 : vector<16x128xf32>
    %6 = arith.mulf %5, %5 : vector<16x128xf32>
    %c0_4 = arith.constant 0 : index
    %c0_5 = arith.constant 0 : index
    %7 = vector.load %arg12[%c0_4, %c0_5] : memref<8x128xf32, #tpu.memory_space<vmem>>, vector<8x128xf32>
    %8 = vector.shape_cast %6 : vector<16x128xf32> to vector<2x8x128xf32>
    %cst = arith.constant dense<0.000000e+00> : vector<8x128xf32>
    %9 = vector.multi_reduction <add>, %8, %cst [0] : vector<2x8x128xf32> to vector<8x128xf32>
    %10 = arith.addf %7, %9 : vector<8x128xf32>
    %c0_6 = arith.constant 0 : index
    %c0_7 = arith.constant 0 : index
    %11 = vector.load %arg12[%c0_6, %c0_7] : memref<8x128xf32, #tpu.memory_space<vmem>>, vector<8x128xf32>
    tpu.vector_store %arg12[%c0_6, %c0_7], %10 {strides = array<i32>} : memref<8x128xf32, #tpu.memory_space<vmem>>, vector<8x128xf32>,
    %c0_i32_8 = arith.constant 0 : i32
    %12 = arith.cmpi eq, %arg1, %c0_i32_8 : i32
    %13 = arith.extui %12 : i1 to i32
    %c0_i32_9 = arith.constant 0 : i32
    %14 = arith.cmpi ne, %13, %c0_i32_9 : i32
    scf.if %14 {
      %c0_10 = arith.constant 0 : index
      %c0_11 = arith.constant 0 : index
      %15 = vector.load %arg12[%c0_10, %c0_11] : memref<8x128xf32, #tpu.memory_space<vmem>>, vector<8x128xf32>
      %16 = vector.shape_cast %15 : vector<8x128xf32> to vector<1x8x128xf32>
      %cst_12 = arith.constant dense<0.000000e+00> : vector<1xf32>
      %17 = vector.multi_reduction <add>, %16, %cst_12 [1, 2] : vector<1x8x128xf32> to vector<1xf32>
      %18 = vector.shape_cast %17 : vector<1xf32> to vector<1x1x1xf32>
      %19 = vector.extract %18[0, 0, 0] : f32 from vector<1x1x1xf32>
      %20 = vector.broadcast %19 : f32 to vector<1x1xf32>
      %c0_13 = arith.constant 0 : index
      %c0_14 = arith.constant 0 : index
      %21 = vector.load %arg8[%c0_13, %c0_14] : memref<1x1xf32, #tpu.memory_space<vmem>>, vector<1x1xf32>
      tpu.vector_store %arg8[%c0_13, %c0_14], %20 {strides = array<i32>} : memref<1x1xf32, #tpu.memory_space<vmem>>, vector<1x1xf32>,
      %c0_15 = arith.constant 0 : index
      %c0_16 = arith.constant 0 : index
      %22 = vector.load %arg4[%c0_15, %c0_16] : memref<2x128xf32, #tpu.memory_space<vmem>>, vector<2x128xf32>
      %c0_17 = arith.constant 0 : index
      %c0_18 = arith.constant 0 : index
      %23 = vector.load %arg5[%c0_17, %c0_18] : memref<2x128xf32, #tpu.memory_space<vmem>>, vector<2x128xf32>
      %24 = arith.subf %22, %23 : vector<2x128xf32>
      %25 = arith.mulf %24, %24 : vector<2x128xf32>
      %26 = vector.shape_cast %25 : vector<2x128xf32> to vector<1x2x128xf32>
      %cst_19 = arith.constant dense<0.000000e+00> : vector<1xf32>
      %27 = vector.multi_reduction <add>, %26, %cst_19 [1, 2] : vector<1x2x128xf32> to vector<1xf32>
      %28 = vector.shape_cast %27 : vector<1xf32> to vector<1x1x1xf32>
      %29 = vector.extract %28[0, 0, 0] : f32 from vector<1x1x1xf32>
      %30 = vector.broadcast %29 : f32 to vector<1x1xf32>
      %c0_20 = arith.constant 0 : index
      %c0_21 = arith.constant 0 : index
      %31 = vector.load %arg9[%c0_20, %c0_21] : memref<1x1xf32, #tpu.memory_space<vmem>>, vector<1x1xf32>
      tpu.vector_store %arg9[%c0_20, %c0_21], %30 {strides = array<i32>} : memref<1x1xf32, #tpu.memory_space<vmem>>, vector<1x1xf32>,
      %c0_22 = arith.constant 0 : index
      %c0_23 = arith.constant 0 : index
      %32 = vector.load %arg6[%c0_22, %c0_23] : memref<2x32xf32, #tpu.memory_space<vmem>>, vector<2x32xf32>
      %c0_24 = arith.constant 0 : index
      %c0_25 = arith.constant 0 : index
      %33 = vector.load %arg7[%c0_24, %c0_25] : memref<2x32xf32, #tpu.memory_space<vmem>>, vector<2x32xf32>
      %34 = arith.subf %32, %33 : vector<2x32xf32>
      %35 = arith.mulf %34, %34 : vector<2x32xf32>
      %36 = vector.shape_cast %35 : vector<2x32xf32> to vector<1x2x32xf32>
      %cst_26 = arith.constant dense<0.000000e+00> : vector<1xf32>
      %37 = vector.multi_reduction <add>, %36, %cst_26 [1, 2] : vector<1x2x32xf32> to vector<1xf32>
      %38 = vector.shape_cast %37 : vector<1xf32> to vector<1x1x1xf32>
      %39 = vector.extract %38[0, 0, 0] : f32 from vector<1x1x1xf32>
      %40 = vector.broadcast %39 : f32 to vector<1x1xf32>
      %c0_27 = arith.constant 0 : index
      %c0_28 = arith.constant 0 : index
      %41 = vector.load %arg10[%c0_27, %c0_28] : memref<1x1xf32, #tpu.memory_space<vmem>>, vector<1x1xf32>
      tpu.vector_store %arg10[%c0_27, %c0_28], %40 {strides = array<i32>} : memref<1x1xf32, #tpu.memory_space<vmem>>, vector<1x1xf32>,
      %42 = arith.mulf %32, %32 : vector<2x32xf32>
      %43 = vector.shape_cast %42 : vector<2x32xf32> to vector<1x2x32xf32>
      %cst_29 = arith.constant dense<0.000000e+00> : vector<1xf32>
      %44 = vector.multi_reduction <add>, %43, %cst_29 [1, 2] : vector<1x2x32xf32> to vector<1xf32>
      %45 = vector.shape_cast %44 : vector<1xf32> to vector<1x1x1xf32>
      %46 = vector.extract %45[0, 0, 0] : f32 from vector<1x1x1xf32>
      %47 = vector.broadcast %46 : f32 to vector<1x1xf32>
      %c0_30 = arith.constant 0 : index
      %c0_31 = arith.constant 0 : index
      %48 = vector.load %arg11[%c0_30, %c0_31] : memref<1x1xf32, #tpu.memory_space<vmem>>, vector<1x1xf32>
      tpu.vector_store %arg11[%c0_30, %c0_31], %47 {strides = array<i32>} : memref<1x1xf32, #tpu.memory_space<vmem>>, vector<1x1xf32>,
    } else {
    }
    return
  }
  func.func @transform_0(%arg0: i32, %arg1: i32) -> (i32, i32) {
    %c1_i32 = arith.constant 1 : i32
    %0 = arith.muli %arg0, %c1_i32 : i32
    %1 = arith.addi %0, %arg1 : i32
    %c0_i32 = arith.constant 0 : i32
    %2 = arith.minsi %1, %c0_i32 : i32
    %c0_i32_0 = arith.constant 0 : i32
    %c0_i32_1 = arith.constant 0 : i32
    return %2, %c0_i32_0 : i32, i32
  }
  func.func @transform_1(%arg0: i32, %arg1: i32) -> (i32, i32) {
    %c1_i32 = arith.constant 1 : i32
    %0 = arith.muli %arg0, %c1_i32 : i32
    %1 = arith.addi %0, %arg1 : i32
    %c0_i32 = arith.constant 0 : i32
    %2 = arith.minsi %1, %c0_i32 : i32
    %c0_i32_0 = arith.constant 0 : i32
    %c0_i32_1 = arith.constant 0 : i32
    return %2, %c0_i32_0 : i32, i32
  }
  func.func @transform_2(%arg0: i32, %arg1: i32) -> (i32, i32) {
    %c0_i32 = arith.constant 0 : i32
    %c0_i32_0 = arith.constant 0 : i32
    %c0_i32_1 = arith.constant 0 : i32
    return %c0_i32, %c0_i32_0 : i32, i32
  }
  func.func @transform_3(%arg0: i32, %arg1: i32) -> (i32, i32) {
    %c0_i32 = arith.constant 0 : i32
    %c0_i32_0 = arith.constant 0 : i32
    %c0_i32_1 = arith.constant 0 : i32
    return %c0_i32, %c0_i32_0 : i32, i32
  }
  func.func @transform_4(%arg0: i32, %arg1: i32) -> (i32, i32) {
    %c0_i32 = arith.constant 0 : i32
    %c0_i32_0 = arith.constant 0 : i32
    %c0_i32_1 = arith.constant 0 : i32
    return %c0_i32, %c0_i32_0 : i32, i32
  }
  func.func @transform_5(%arg0: i32, %arg1: i32) -> (i32, i32) {
    %c0_i32 = arith.constant 0 : i32
    %c0_i32_0 = arith.constant 0 : i32
    %c0_i32_1 = arith.constant 0 : i32
    return %c0_i32, %c0_i32_0 : i32, i32
  }
  func.func @transform_6(%arg0: i32, %arg1: i32) -> (i32, i32) {
    %c0_i32 = arith.constant 0 : i32
    %c0_i32_0 = arith.constant 0 : i32
    return %arg0, %c0_i32 : i32, i32
  }
  func.func @transform_7(%arg0: i32, %arg1: i32) -> (i32, i32) {
    %c0_i32 = arith.constant 0 : i32
    %c0_i32_0 = arith.constant 0 : i32
    return %arg0, %c0_i32 : i32, i32
  }
  func.func @transform_8(%arg0: i32, %arg1: i32) -> (i32, i32) {
    %c0_i32 = arith.constant 0 : i32
    %c0_i32_0 = arith.constant 0 : i32
    return %arg0, %c0_i32 : i32, i32
  }
  func.func @transform_9(%arg0: i32, %arg1: i32) -> (i32, i32) {
    %c0_i32 = arith.constant 0 : i32
    %c0_i32_0 = arith.constant 0 : i32
    return %arg0, %c0_i32 : i32, i32
  }
}

</mosaic_0001>

<llo_original>
// kernel: generator_loss.1
$region0: #{generator_loss.1}
  #allocation0 [shape = 'u32[]', space=smem, size = 0x4, offset = 0x4, fixed_abs, tag = 'smem constant byte address 0x4 - core index']
  #allocation1 [shape = 'u32[72,128]{1,0:T(1,128)}', space=vmem, size = 0x9000, scoped, tag = 'internal scratch']
  #allocation2 [shape = 'f32[8,128]{1,0:T(8,128)}', space=vmem, size = 0x1000, scoped, tag = 'scratch operand']
  %s0 = inlined_call_operand.vmem [shape: f32[16,128], index: 0, kind: input, shape index: {}]
  %s1 = inlined_call_operand.vmem [shape: f32[16,128], index: 1, kind: input, shape index: {}]
  %s2 = inlined_call_operand.vmem [shape: f32[2,128], index: 2, kind: input, shape index: {}]
  %s3 = inlined_call_operand.vmem [shape: f32[2,128], index: 3, kind: input, shape index: {}]
  %s4 = inlined_call_operand.vmem [shape: f32[2,32], index: 4, kind: input, shape index: {}]
  %s5 = inlined_call_operand.vmem [shape: f32[2,32], index: 5, kind: input, shape index: {}]
  %s6 = inlined_call_operand.hbm [shape: f32[1,1], index: 6, kind: output, shape index: {0}]
  %s7 = inlined_call_operand.hbm [shape: f32[1,1], index: 7, kind: output, shape index: {1}]
  %s8 = inlined_call_operand.hbm [shape: f32[1,1], index: 8, kind: output, shape index: {2}]
  %s9 = inlined_call_operand.hbm [shape: f32[1,1], index: 9, kind: output, shape index: {3}]
  %10 = xla_tuple %s6, %s7, %s8, %s9
  %s11 = sld [smem:[#allocation0]]
  $region66: #{generator_loss.1} parent=0
    _
  %s13 = ssub.s32 1, %s11
  %s14 = scalar_select 0, %s13, %s11
  $region1: #{generator_loss.1} parent=0
    #allocation3 [shape = 'u8[512]{0}', space=vmem, size = 0x400, scoped, tag = 'output window, operand 0, single buffered']
    #allocation4 [shape = 's32[1]{0}', space=sflag, size = 0x4, scoped, tag = 'scoped memory for generator_loss.1']
    #allocation5 [shape = 'u8[512]{0}', space=vmem, size = 0x400, scoped, tag = 'output window, operand 1, single buffered']
    #allocation6 [shape = 's32[1]{0}', space=sflag, size = 0x4, scoped, tag = 'scoped memory for generator_loss.1']
    #allocation7 [shape = 'u8[512]{0}', space=vmem, size = 0x400, scoped, tag = 'output window, operand 2, single buffered']
    #allocation8 [shape = 'u8[512]{0}', space=vmem, size = 0x400, scoped, tag = 'output window, operand 3, single buffered']
    #allocation9 [shape = 's32[1]{0}', space=sflag, size = 0x4, scoped, tag = 'scoped memory for generator_loss.1']
    %15 = vsyncpa [#allocation4], 0
    %16 = vsyncpa [#allocation6], 0
    %17 = vsyncpa [#allocation9], 0
    // Predicated region
    $region2: #{generator_loss.1} parent=1 // pred_check
      _
    $region3: #{generator_loss.1} parent=1 // pred_check_branch
      %19 = sbr.rel (0) target = $region5
    $region4: #{generator_loss.1} parent=1 // pred_region
      %s20 = sadd.s32 0, 0
      %p21 = scmp.lt.s32.totalorder %s20, 0
      %s22 = scalar_select %p21, %s20, 0
      %s23 = smul.u32 2, %s22
      %p24 = scmp.lt.s32.totalorder %s23, 1
      %s25 = scalar_select %p24, %s23, 1
      %s26 = smul.addr %s25, 8
      %s27 = scalar_lea.vmem %s0, %s26
      %s28 = sadd.s32 0, 0
      %p29 = scmp.lt.s32.totalorder %s28, 0
      %s30 = scalar_select %p29, %s28, 0
      %s31 = smul.u32 2, %s30
    $region5: #{generator_loss.1} parent=1 // pred_fallthru
      _
    // Predicated region
    $region6: #{generator_loss.1} parent=1 // pred_check
      _
    $region7: #{generator_loss.1} parent=1 // pred_check_branch
      %33 = sbr.rel (0) target = $region9
    $region8: #{generator_loss.1} parent=1 // pred_region
      %s34 = sadd.s32 0, 0
      %p35 = scmp.lt.s32.totalorder %s34, 0
      %s36 = scalar_select %p35, %s34, 0
      %s37 = smul.u32 2, %s36
      %p38 = scmp.lt.s32.totalorder %s37, 1
      %s39 = scalar_select %p38, %s37, 1
      %s40 = smul.addr %s39, 8
      %s41 = scalar_lea.vmem %s1, %s40
      %s42 = sadd.s32 0, 0
      %p43 = scmp.lt.s32.totalorder %s42, 0
      %s44 = scalar_select %p43, %s42, 0
      %s45 = smul.u32 2, %s44
    $region9: #{generator_loss.1} parent=1 // pred_fallthru
      _
    // Predicated region
    $region10: #{generator_loss.1} parent=1 // pred_check
      _
    $region11: #{generator_loss.1} parent=1 // pred_check_branch
      %47 = sbr.rel (0) target = $region13
    $region12: #{generator_loss.1} parent=1 // pred_region
      _
    $region13: #{generator_loss.1} parent=1 // pred_fallthru
      _
    // Predicated region
    $region14: #{generator_loss.1} parent=1 // pred_check
      _
    $region15: #{generator_loss.1} parent=1 // pred_check_branch
      %49 = sbr.rel (0) target = $region17
    $region16: #{generator_loss.1} parent=1 // pred_region
      _
    $region17: #{generator_loss.1} parent=1 // pred_fallthru
      _
    // Predicated region
    $region18: #{generator_loss.1} parent=1 // pred_check
      _
    $region19: #{generator_loss.1} parent=1 // pred_check_branch
      %51 = sbr.rel (0) target = $region21
    $region20: #{generator_loss.1} parent=1 // pred_region
      _
    $region21: #{generator_loss.1} parent=1 // pred_fallthru
      _
    // Predicated region
    $region22: #{generator_loss.1} parent=1 // pred_check
      _
    $region23: #{generator_loss.1} parent=1 // pred_check_branch
      %53 = sbr.rel (0) target = $region25
    $region24: #{generator_loss.1} parent=1 // pred_region
      _
    $region25: #{generator_loss.1} parent=1 // pred_fallthru
      _
    %s54 = sadd.s32 0, 0
    %p55 = scmp.lt.s32.totalorder %s54, 0
    %s56 = scalar_select %p55, %s54, 0
    %s57 = smul.u32 2, %s56
    %p58 = scmp.lt.s32.totalorder %s57, 1
    %s59 = scalar_select %p58, %s57, 1
    %s60 = smul.addr %s59, 8
    %s61 = scalar_lea.vmem %s0, %s60
    %s62 = sadd.s32 0, 0
    %p63 = scmp.lt.s32.totalorder %s62, 0
    %s64 = scalar_select %p63, %s62, 0
    %s65 = smul.u32 2, %s64
    %p66 = scmp.lt.s32.totalorder %s65, 1
    %s67 = scalar_select %p66, %s65, 1
    %s68 = smul.addr %s67, 8
    %s69 = scalar_lea.vmem %s1, %s68
    %s70 = sadd.s32 0, 0
    %p71 = scmp.lt.s32.totalorder %s70, 0
    %s72 = scalar_select %p71, %s70, 0
    %s73 = smul.u32 2, %s72
    %p74 = scmp.lt.s32.totalorder %s73, 1
    %s75 = scalar_select %p74, %s73, 1
    %s76 = smul.addr %s75, 8
    %s77 = scalar_lea.vmem %s0, %s76
    %s78 = sadd.s32 0, 0
    %p79 = scmp.lt.s32.totalorder %s78, 0
    %s80 = scalar_select %p79, %s78, 0
    %s81 = smul.u32 2, %s80
    %s82 = sadd.s32 0, 0
    %p83 = scmp.lt.s32.totalorder %s82, 0
    %s84 = scalar_select %p83, %s82, 0
    %s85 = smul.u32 2, %s84
    %p86 = scmp.lt.s32.totalorder %s85, 1
    %s87 = scalar_select %p86, %s85, 1
    %s88 = smul.addr %s87, 8
    %s89 = scalar_lea.vmem %s1, %s88
    %s90 = sadd.s32 0, 0
    %p91 = scmp.lt.s32.totalorder %s90, 0
    %s92 = scalar_select %p91, %s90, 0
    %s93 = smul.u32 2, %s92
    %p94 = scmp.eq.s32.totalorder 0, 0
    // Predicated region
    $region26: #{generator_loss.1} parent=1 // pred_check
      %p95 = pneg %p94
    $region27: #{generator_loss.1} parent=1 // pred_check_branch
      %97 = sbr.rel (%p95) target = $region29
    $region28: #{generator_loss.1} parent=1 // pred_region
      %98 = vst [vmem:[#allocation2] sm:$0xff] 0.0
    $region29: #{generator_loss.1} parent=1 // pred_fallthru
      _
    %v99 = vld [vmem:[%s77] sm:$0xff]
    %v100 = vld [vmem:[%s77 + $0x8] sm:$0xff]
    %v101 = vld [vmem:[%s89] sm:$0xff]
    %v102 = vld [vmem:[%s89 + $0x8] sm:$0xff]
    %v103 = vsub.f32 %v99, %v101
    %v104 = vsub.f32 %v100, %v102
    %v105 = vmul.f32 %v103, %v103
    %v106 = vmul.f32 %v104, %v104
    %v107 = vld [vmem:[#allocation2] sm:$0xff]
    %v108 = vadd.f32 %v105, %v106
    %v109 = vadd.f32 %v107, %v108
    %110 = vst [vmem:[#allocation2] sm:$0xff] %v109
    // Predicated region
    $region30: #{generator_loss.1} parent=1 // pred_check
      %p111 = pneg %p94
    $region31: #{generator_loss.1} parent=1 // pred_check_branch
      %113 = sbr.rel (%p111) target = $region33
    $region32: #{generator_loss.1} parent=1 // pred_region
      %v114 = vld [vmem:[#allocation2] sm:$0xff]
      %115 = vadd.xlane.f32.xlu0 %v114
      %v116 = vpop.xlane.xlu0 %115
      %v117 = vrot.slane %v116, 4
      %v118 = vadd.f32 %v116, %v117
      %v119 = vrot.slane %v118, 2
      %v120 = vadd.f32 %v118, %v119
      %v121 = vrot.slane %v120, 1
      %v122 = vadd.f32 %v120, %v121
      %s123 = vtos %v122
      %v124 = vstv %s123
      %vm125 = vcmask 0
      %126 = vst.msk [vmem:[#allocation3] sm:$0x1] %vm125, %v124
      %v127 = vld [vmem:[%s2] sm:$0x3]
      %v128 = vld [vmem:[%s3] sm:$0x3]
      %v129 = vsub.f32 %v127, %v128
      %v130 = vmul.f32 %v129, %v129
      %vm131 = vcmask 1041408
      %v132 = vsel %vm131, %v130, 0.0
      %133 = vadd.xlane.f32.xlu0 %v132
      %v134 = vpop.xlane.xlu0 %133
      %v135 = vrot.slane %v134, 4
      %v136 = vadd.f32 %v134, %v135
      %v137 = vrot.slane %v136, 2
      %v138 = vadd.f32 %v136, %v137
      %v139 = vrot.slane %v138, 1
      %v140 = vadd.f32 %v138, %v139
      %s141 = vtos %v140
      %v142 = vstv %s141
      %143 = vst.msk [vmem:[#allocation5] sm:$0x1] %vm125, %v142
      %v144 = vld [vmem:[%s4] sm:$0x3]
      %v145 = vld [vmem:[%s5] sm:$0x3]
      %v146 = vsub.f32 %v144, %v145
      %v147 = vmul.f32 %v146, %v146
      %vm148 = vcmask 254976
      %v149 = vsel %vm148, %v147, 0.0
      %150 = vadd.xlane.f32.xlu0 %v149
      %v151 = vpop.xlane.xlu0 %150
      %v152 = vrot.slane %v151, 4
      %v153 = vadd.f32 %v151, %v152
      %v154 = vrot.slane %v153, 2
      %v155 = vadd.f32 %v153, %v154
      %v156 = vrot.slane %v155, 1
      %v157 = vadd.f32 %v155, %v156
      %s158 = vtos %v157
      %v159 = vstv %s158
      %160 = vst.msk [vmem:[#allocation7] sm:$0x1] %vm125, %v159
      %v161 = vmul.f32 %v144, %v144
      %v162 = vsel %vm148, %v161, 0.0
      %163 = vadd.xlane.f32.xlu0 %v162
      %v164 = vpop.xlane.xlu0 %163
      %v165 = vrot.slane %v164, 4
      %v166 = vadd.f32 %v164, %v165
      %v167 = vrot.slane %v166, 2
      %v168 = vadd.f32 %v166, %v167
      %v169 = vrot.slane %v168, 1
      %v170 = vadd.f32 %v168, %v169
      %s171 = vtos %v170
      %v172 = vstv %s171
      %173 = vst.msk [vmem:[#allocation8] sm:$0x1] %vm125, %v172
    $region33: #{generator_loss.1} parent=1 // pred_fallthru
      _
    // Predicated region
    $region34: #{generator_loss.1} parent=1 // pred_check
      _
    $region35: #{generator_loss.1} parent=1 // pred_check_branch
      %175 = sbr.rel (0) target = $region37
    $region36: #{generator_loss.1} parent=1 // pred_region
      %177 = vsyncadd [#allocation4], 0
      %s179 = sshll.u32 [#allocation3], 4
      %s180 = int_to_ptr.vmem [resolvable:$true] %s179
      %s181 = sshll.u32 %s6, 4
      %s182 = int_to_ptr.hbm [resolvable:$true] %s181
      %184 = dma.vmem_to_hbm [thread:$0]  %s180, 16, %s182, [#allocation4]
    $region37: #{generator_loss.1} parent=1 // pred_fallthru
      _
    // Predicated region
    $region38: #{generator_loss.1} parent=1 // pred_check
      _
    $region39: #{generator_loss.1} parent=1 // pred_check_branch
      %186 = sbr.rel (0) target = $region41
    $region40: #{generator_loss.1} parent=1 // pred_region
      %188 = vsyncadd [#allocation6], 0
      %s190 = sshll.u32 [#allocation5], 4
      %s191 = int_to_ptr.vmem [resolvable:$true] %s190
      %s192 = sshll.u32 %s7, 4
      %s193 = int_to_ptr.hbm [resolvable:$true] %s192
      %195 = dma.vmem_to_hbm [thread:$0]  %s191, 16, %s193, [#allocation6]
    $region41: #{generator_loss.1} parent=1 // pred_fallthru
      _
    // Predicated region
    $region42: #{generator_loss.1} parent=1 // pred_check
      _
    $region43: #{generator_loss.1} parent=1 // pred_check_branch
      %197 = sbr.rel (0) target = $region45
    $region44: #{generator_loss.1} parent=1 // pred_region
      %199 = vsyncadd [#allocation6], 0
      %s201 = sshll.u32 [#allocation7], 4
      %s202 = int_to_ptr.vmem [resolvable:$true] %s201
      %s203 = sshll.u32 %s8, 4
      %s204 = int_to_ptr.hbm [resolvable:$true] %s203
      %206 = dma.vmem_to_hbm [thread:$0]  %s202, 16, %s204, [#allocation6]
    $region45: #{generator_loss.1} parent=1 // pred_fallthru
      _
    // Predicated region
    $region46: #{generator_loss.1} parent=1 // pred_check
      _
    $region47: #{generator_loss.1} parent=1 // pred_check_branch
      %208 = sbr.rel (0) target = $region49
    $region48: #{generator_loss.1} parent=1 // pred_region
      %210 = vsyncadd [#allocation9], 0
      %s212 = sshll.u32 [#allocation8], 4
      %s213 = int_to_ptr.vmem [resolvable:$true] %s212
      %s214 = sshll.u32 %s9, 4
      %s215 = int_to_ptr.hbm [resolvable:$true] %s214
      %217 = dma.vmem_to_hbm [thread:$0]  %s213, 16, %s215, [#allocation9]
    $region49: #{generator_loss.1} parent=1 // pred_fallthru
      _
    // Predicated region
    $region50: #{generator_loss.1} parent=1 // pred_check
      _
    $region51: #{generator_loss.1} parent=1 // pred_check_branch
      %219 = sbr.rel (0) target = $region53
    $region52: #{generator_loss.1} parent=1 // pred_region
      %221 = dma.done [#allocation4], 16
    $region53: #{generator_loss.1} parent=1 // pred_fallthru
      _
    // Predicated region
    $region54: #{generator_loss.1} parent=1 // pred_check
      _
    $region55: #{generator_loss.1} parent=1 // pred_check_branch
      %223 = sbr.rel (0) target = $region57
    $region56: #{generator_loss.1} parent=1 // pred_region
      %225 = dma.done [#allocation6], 16
    $region57: #{generator_loss.1} parent=1 // pred_fallthru
      _
    // Predicated region
    $region58: #{generator_loss.1} parent=1 // pred_check
      _
    $region59: #{generator_loss.1} parent=1 // pred_check_branch
      %227 = sbr.rel (0) target = $region61
    $region60: #{generator_loss.1} parent=1 // pred_region
      %229 = dma.done [#allocation6], 16
    $region61: #{generator_loss.1} parent=1 // pred_fallthru
      _
    // Predicated region
    $region62: #{generator_loss.1} parent=1 // pred_check
      _
    $region63: #{generator_loss.1} parent=1 // pred_check_branch
      %231 = sbr.rel (0) target = $region65
    $region64: #{generator_loss.1} parent=1 // pred_region
      %233 = dma.done [#allocation9], 16
    $region65: #{generator_loss.1} parent=1 // pred_fallthru
      _
    %234 = vsyncpa [#allocation4], 1
    %235 = vsyncpa [#allocation6], 1
    %236 = vsyncpa [#allocation9], 1

</llo_original>
